<compile_context>
chip_gen: v7x
topology: tpu7x:2x2x1
jax: 0.10.0
libtpu: 0.0.40
codegen_flags: <defaults>
</compile_context>

<pallas_src>
import functools

import jax
import jax.numpy as jnp
from jax.experimental import pallas as pl
from jax.experimental.pallas import tpu as pltpu

LANES = 128          # lane width: point axis folded into (rows, 128)
TR_MAX = 2048        # max sublane rows per grid step (3 MB of input / step)
TARGET_BLOCKS = 8    # aim for >= this many blocks so the pipeline overlaps


def _criterion_kernel(thr_ref, d2_ref, dz_ref, rmax_ref, out_ref, *, n_points):
    """Masked partial-sum reduction for one (TR, 128) tile of points.

    out_ref is the (1, 3, 8, 128) per-core partial-sum block, resident in VMEM
    across the reduction axis:
      out[0, 0] : sum of masked sqrt(dist2)   (xy distance)
      out[0, 1] : sum of masked |dz|
      out[0, 2] : masked point count
    """
    c = pl.program_id(0)            # core-split axis ("parallel")
    i = pl.program_id(1)            # reduction axis ("arbitrary")
    steps = pl.num_programs(1)

    @pl.when(i == 0)
    def _():
        out_ref[...] = jnp.zeros_like(out_ref)

    thr = thr_ref[0]

    tr = d2_ref.shape[0]            # static rows per block (multiple of 8)
    block = c * steps + i           # global block index along the row axis
    row = jax.lax.broadcasted_iota(jnp.int32, (tr, LANES), 0)
    lane = jax.lax.broadcasted_iota(jnp.int32, (tr, LANES), 1)
    idx = (block * tr + row) * LANES + lane      # global point index

    # Robust mask: inside the real N points AND both residuals <= threshold
    # (rmax = max(r1, r2) was precomputed in the fused wrapper pass).
    mask = jnp.logical_and(idx < n_points,
                           rmax_ref[...] <= thr).astype(jnp.float32)

    dist = jnp.sqrt(d2_ref[...]) * mask
    height = jnp.abs(dz_ref[...]) * mask

    # Sublane-group partial reduction: (tr, 128) -> (tr//8, 8, 128) is a free
    # re-view (minor (8, 128) tile preserved); sum over the leading axis is
    # pure VPU adds.  Keeps the accumulator at one vreg per quantity.
    g = tr // 8
    out_ref[0, 0] = out_ref[0, 0] + jnp.sum(dist.reshape(g, 8, LANES), axis=0)
    out_ref[0, 1] = out_ref[0, 1] + jnp.sum(height.reshape(g, 8, LANES), axis=0)
    out_ref[0, 2] = out_ref[0, 2] + jnp.sum(mask.reshape(g, 8, LANES), axis=0)


def criterion_finetune_dis(pred1_P3, pred2_P3, residual1_P, residual2_P,
                           residual_threshold):
    n = pred1_P3.shape[0]

    # ---- Fused, transpose-free pre-pass (one HBM read of each input). -------
    # Upcasts happen inside the fusion: no materialized f32 copies of bf16 in.
    d = pred1_P3.astype(jnp.float32) - pred2_P3.astype(jnp.float32)   # (N, 3)
    dist2 = d[:, 0] * d[:, 0] + d[:, 1] * d[:, 1]                     # (N,)
    dz = d[:, 2]                                                      # (N,)
    # (r1 <= t) & (r2 <= t)  <=>  max(r1, r2) <= t   (max propagates NaN).
    rmax = jnp.maximum(residual1_P.astype(jnp.float32),
                       residual2_P.astype(jnp.float32))               # (N,)

    # ---- Tiling: fold the point axis into a lane-dense (rows, 128) grid. ----
    rows = max(1, pl.cdiv(n, LANES))
    tr = -(-rows // TARGET_BLOCKS)                  # cdiv(rows, TARGET_BLOCKS)
    tr = min(TR_MAX, max(8, -(-tr // 8) * 8))       # multiple of 8, capped
    num_blocks = -(-rows // tr)
    num_blocks += num_blocks % 2                    # even -> 2-way core split
    rows_pad = num_blocks * tr
    steps = num_blocks // 2
    pad = rows_pad * LANES - n

    def to_tiles(x):  # pad fuses with the producer; reshape is a bitcast
        return jnp.pad(x, (0, pad)).reshape(rows_pad, LANES)

    d2_t, dz_t, rmax_t = to_tiles(dist2), to_tiles(dz), to_tiles(rmax)
    thr_smem = jnp.reshape(jnp.asarray(residual_threshold, jnp.float32), (1,))

    row_spec = pl.BlockSpec((tr, LANES), lambda c, i: (c * steps + i, 0))

    partials = pl.pallas_call(
        functools.partial(_criterion_kernel, n_points=n),
        out_shape=jax.ShapeDtypeStruct((2, 3, 8, LANES), jnp.float32),
        grid_spec=pltpu.PrefetchScalarGridSpec(
            num_scalar_prefetch=0,
            grid=(2, steps),
            in_specs=[
                pl.BlockSpec(memory_space=pltpu.MemorySpace.SMEM),  # threshold
                row_spec,                                           # dist2
                row_spec,                                           # dz
                row_spec,                                           # rmax
            ],
            out_specs=pl.BlockSpec((1, 3, 8, LANES),
                                   lambda c, i: (c, 0, 0, 0)),
        ),
        compiler_params=pltpu.CompilerParams(
            dimension_semantics=("parallel", "arbitrary")),
    )(thr_smem, d2_t, dz_t, rmax_t)

    # Combine the two per-core partials + tiny lane reduction in the wrapper.
    sums = jnp.sum(partials, axis=(0, 2, 3))        # (3,)
    cnt = sums[2]
    dis_obj = sums[0] / cnt
    dis_height = sums[1] * 100.0 / cnt
    loss_dis = dis_obj + dis_height
    return loss_dis, dis_obj, dis_height


def _reference(pred1, pred2, r1, r2, thr):
    p1 = pred1.astype(jnp.float32)
    p2 = pred2.astype(jnp.float32)
    m = ((r1.astype(jnp.float32) <= thr)
         & (r2.astype(jnp.float32) <= thr)).astype(jnp.float32)
    d = p1 - p2
    dist = jnp.sqrt(d[:, 0] ** 2 + d[:, 1] ** 2)
    height = jnp.abs(d[:, 2]) * 100.0
    cnt = m.sum()
    dis_obj = (dist * m).sum() / cnt
    dis_height = (height * m).sum() / cnt
    return dis_obj + dis_height, dis_obj, dis_height


def _run_case(key, n, thr):
    k1, k2, k3, k4 = jax.random.split(key, 4)
    pred1 = jax.random.normal(k1, (n, 3), dtype=jnp.float32)
    pred2 = pred1 + 0.1 * jax.random.normal(k2, (n, 3), dtype=jnp.float32)
    r1 = jax.random.uniform(k3, (n,), dtype=jnp.float32)
    r2 = jax.random.uniform(k4, (n,), dtype=jnp.float32)

    loss, obj, h = criterion_finetune_dis(pred1, pred2, r1, r2, thr)
    jax.block_until_ready(loss)

    ref_loss, ref_obj, ref_h = _reference(pred1, pred2, r1, r2, thr)
    assert jnp.allclose(loss, ref_loss, rtol=1e-4, atol=1e-5), (n, loss, ref_loss)
    assert jnp.allclose(obj, ref_obj, rtol=1e-4, atol=1e-5), (n, obj, ref_obj)
    assert jnp.allclose(h, ref_h, rtol=1e-4, atol=1e-5), (n, h, ref_h)


if __name__ == "__main__":
    key = jax.random.PRNGKey(0)
    k_small, k_med = jax.random.split(key)

    # Small N (not a multiple of 128): one block per core, tail index masking.
    _run_case(k_small, 200, 0.5)
    # Medium N: multi-step pipelined grid (grid = (2, steps) with steps > 1).
    _run_case(k_med, 12001, 0.5)

    print("KERNEL_OK")
</pallas_src>

<mosaic_0001>
module attributes {stable_mosaic.version = 11 : i64} {
  func.func @_criterion_kernel(%arg0: i32, %arg1: i32, %arg2: memref<1xf32, #tpu.memory_space<smem>>, %arg3: memref<8x128xf32, #tpu.memory_space<vmem>>, %arg4: memref<8x128xf32, #tpu.memory_space<vmem>>, %arg5: memref<8x128xf32, #tpu.memory_space<vmem>>, %arg6: memref<1x3x8x128xf32, #tpu.memory_space<vmem>>) attributes {dimension_semantics = [#tpu.dimension_semantics<parallel>, #tpu.dimension_semantics<arbitrary>], iteration_bounds = array<i64: 2, 1>, scalar_prefetch = 0 : i64, scratch_operands = 0 : i64, tpu.core_type = #tpu.core_type<tc>, window_params = [{transform_indices = @transform_0, window_bounds = array<i64: 1>}, {transform_indices = @transform_1, window_bounds = array<i64: 8, 128>}, {transform_indices = @transform_2, window_bounds = array<i64: 8, 128>}, {transform_indices = @transform_3, window_bounds = array<i64: 8, 128>}, {transform_indices = @transform_4, window_bounds = array<i64: 1, 3, 8, 128>}]} {
    %c0_i32 = arith.constant 0 : i32
    %0 = arith.cmpi eq, %arg1, %c0_i32 : i32
    %1 = arith.extui %0 : i1 to i32
    %c0_i32_0 = arith.constant 0 : i32
    %2 = arith.cmpi ne, %1, %c0_i32_0 : i32
    scf.if %2 {
      %cst_31 = arith.constant 0.000000e+00 : f32
      %52 = vector.broadcast %cst_31 : f32 to vector<1x3x8x128xf32>
      %c0_32 = arith.constant 0 : index
      %c0_33 = arith.constant 0 : index
      %c0_34 = arith.constant 0 : index
      %c0_35 = arith.constant 0 : index
      %53 = vector.load %arg6[%c0_32, %c0_33, %c0_34, %c0_35] : memref<1x3x8x128xf32, #tpu.memory_space<vmem>>, vector<1x3x8x128xf32>
      tpu.vector_store %arg6[%c0_32, %c0_33, %c0_34, %c0_35], %52 {strides = array<i32>} : memref<1x3x8x128xf32, #tpu.memory_space<vmem>>, vector<1x3x8x128xf32>,
    } else {
    }
    %c0 = arith.constant 0 : index
    %3 = memref.load %arg2[%c0] : memref<1xf32, #tpu.memory_space<smem>>
    %c1_i32 = arith.constant 1 : i32
    %4 = arith.muli %arg0, %c1_i32 : i32
    %5 = arith.addi %4, %arg1 : i32
    %6 = tpu.iota {dimensions = array<i32: 0>} : vector<8x128xi32>
    %7 = tpu.iota {dimensions = array<i32: 1>} : vector<8x128xi32>
    %c8_i32 = arith.constant 8 : i32
    %8 = arith.muli %5, %c8_i32 : i32
    %9 = vector.broadcast %8 : i32 to vector<8x128xi32>
    %10 = arith.addi %9, %6 : vector<8x128xi32>
    %c128_i32 = arith.constant 128 : i32
    %11 = vector.broadcast %c128_i32 : i32 to vector<8x128xi32>
    %12 = arith.muli %10, %11 : vector<8x128xi32>
    %13 = arith.addi %12, %7 : vector<8x128xi32>
    %c200_i32 = arith.constant 200 : i32
    %14 = vector.broadcast %c200_i32 : i32 to vector<8x128xi32>
    %15 = arith.cmpi slt, %13, %14 : vector<8x128xi32>
    %c0_1 = arith.constant 0 : index
    %c0_2 = arith.constant 0 : index
    %16 = vector.load %arg5[%c0_1, %c0_2] : memref<8x128xf32, #tpu.memory_space<vmem>>, vector<8x128xf32>
    %17 = vector.broadcast %3 : f32 to vector<8x128xf32>
    %18 = arith.cmpf ole, %16, %17 : vector<8x128xf32>
    %19 = arith.andi %15, %18 : vector<8x128xi1>
    %20 = arith.extui %19 : vector<8x128xi1> to vector<8x128xi32>
    %21 = arith.sitofp %20 : vector<8x128xi32> to vector<8x128xf32>
    %c0_3 = arith.constant 0 : index
    %c0_4 = arith.constant 0 : index
    %22 = vector.load %arg3[%c0_3, %c0_4] : memref<8x128xf32, #tpu.memory_space<vmem>>, vector<8x128xf32>
    %23 = math.sqrt %22 : vector<8x128xf32>
    %24 = arith.mulf %23, %21 : vector<8x128xf32>
    %c0_5 = arith.constant 0 : index
    %c0_6 = arith.constant 0 : index
    %25 = vector.load %arg4[%c0_5, %c0_6] : memref<8x128xf32, #tpu.memory_space<vmem>>, vector<8x128xf32>
    %26 = math.absf %25 : vector<8x128xf32>
    %27 = arith.mulf %26, %21 : vector<8x128xf32>
    %c0_7 = arith.constant 0 : index
    %c0_8 = arith.constant 0 : index
    %c0_9 = arith.constant 0 : index
    %c0_10 = arith.constant 0 : index
    %28 = vector.load %arg6[%c0_7, %c0_8, %c0_9, %c0_10] : memref<1x3x8x128xf32, #tpu.memory_space<vmem>>, vector<1x1x8x128xf32>
    %29 = vector.shape_cast %28 : vector<1x1x8x128xf32> to vector<8x128xf32>
    %30 = vector.shape_cast %24 : vector<8x128xf32> to vector<1x8x128xf32>
    %cst = arith.constant dense<0.000000e+00> : vector<8x128xf32>
    %31 = vector.multi_reduction <add>, %30, %cst [0] : vector<1x8x128xf32> to vector<8x128xf32>
    %32 = arith.addf %29, %31 : vector<8x128xf32>
    %c0_11 = arith.constant 0 : index
    %c0_12 = arith.constant 0 : index
    %c0_13 = arith.constant 0 : index
    %c0_14 = arith.constant 0 : index
    %33 = vector.load %arg6[%c0_11, %c0_12, %c0_13, %c0_14] : memref<1x3x8x128xf32, #tpu.memory_space<vmem>>, vector<1x1x8x128xf32>
    %34 = vector.shape_cast %33 : vector<1x1x8x128xf32> to vector<8x128xf32>
    %35 = vector.shape_cast %32 : vector<8x128xf32> to vector<1x1x8x128xf32>
    tpu.vector_store %arg6[%c0_11, %c0_12, %c0_13, %c0_14], %35 {strides = array<i32>} : memref<1x3x8x128xf32, #tpu.memory_space<vmem>>, vector<1x1x8x128xf32>,
    %c0_15 = arith.constant 0 : index
    %c1 = arith.constant 1 : index
    %c0_16 = arith.constant 0 : index
    %c0_17 = arith.constant 0 : index
    %36 = vector.load %arg6[%c0_15, %c1, %c0_16, %c0_17] : memref<1x3x8x128xf32, #tpu.memory_space<vmem>>, vector<1x1x8x128xf32>
    %37 = vector.shape_cast %36 : vector<1x1x8x128xf32> to vector<8x128xf32>
    %38 = vector.shape_cast %27 : vector<8x128xf32> to vector<1x8x128xf32>
    %cst_18 = arith.constant dense<0.000000e+00> : vector<8x128xf32>
    %39 = vector.multi_reduction <add>, %38, %cst_18 [0] : vector<1x8x128xf32> to vector<8x128xf32>
    %40 = arith.addf %37, %39 : vector<8x128xf32>
    %c0_19 = arith.constant 0 : index
    %c1_20 = arith.constant 1 : index
    %c0_21 = arith.constant 0 : index
    %c0_22 = arith.constant 0 : index
    %41 = vector.load %arg6[%c0_19, %c1_20, %c0_21, %c0_22] : memref<1x3x8x128xf32, #tpu.memory_space<vmem>>, vector<1x1x8x128xf32>
    %42 = vector.shape_cast %41 : vector<1x1x8x128xf32> to vector<8x128xf32>
    %43 = vector.shape_cast %40 : vector<8x128xf32> to vector<1x1x8x128xf32>
    tpu.vector_store %arg6[%c0_19, %c1_20, %c0_21, %c0_22], %43 {strides = array<i32>} : memref<1x3x8x128xf32, #tpu.memory_space<vmem>>, vector<1x1x8x128xf32>,
    %c0_23 = arith.constant 0 : index
    %c2 = arith.constant 2 : index
    %c0_24 = arith.constant 0 : index
    %c0_25 = arith.constant 0 : index
    %44 = vector.load %arg6[%c0_23, %c2, %c0_24, %c0_25] : memref<1x3x8x128xf32, #tpu.memory_space<vmem>>, vector<1x1x8x128xf32>
    %45 = vector.shape_cast %44 : vector<1x1x8x128xf32> to vector<8x128xf32>
    %46 = vector.shape_cast %21 : vector<8x128xf32> to vector<1x8x128xf32>
    %cst_26 = arith.constant dense<0.000000e+00> : vector<8x128xf32>
    %47 = vector.multi_reduction <add>, %46, %cst_26 [0] : vector<1x8x128xf32> to vector<8x128xf32>
    %48 = arith.addf %45, %47 : vector<8x128xf32>
    %c0_27 = arith.constant 0 : index
    %c2_28 = arith.constant 2 : index
    %c0_29 = arith.constant 0 : index
    %c0_30 = arith.constant 0 : index
    %49 = vector.load %arg6[%c0_27, %c2_28, %c0_29, %c0_30] : memref<1x3x8x128xf32, #tpu.memory_space<vmem>>, vector<1x1x8x128xf32>
    %50 = vector.shape_cast %49 : vector<1x1x8x128xf32> to vector<8x128xf32>
    %51 = vector.shape_cast %48 : vector<8x128xf32> to vector<1x1x8x128xf32>
    tpu.vector_store %arg6[%c0_27, %c2_28, %c0_29, %c0_30], %51 {strides = array<i32>} : memref<1x3x8x128xf32, #tpu.memory_space<vmem>>, vector<1x1x8x128xf32>,
    return
  }
  func.func @transform_0(%arg0: i32, %arg1: i32) -> i32 {
    %c0_i32 = arith.constant 0 : i32
    %c0_i32_0 = arith.constant 0 : i32
    return %c0_i32 : i32
  }
  func.func @transform_1(%arg0: i32, %arg1: i32) -> (i32, i32) {
    %c1_i32 = arith.constant 1 : i32
    %0 = arith.muli %arg0, %c1_i32 : i32
    %1 = arith.addi %0, %arg1 : i32
    %c0_i32 = arith.constant 0 : i32
    %c0_i32_0 = arith.constant 0 : i32
    return %1, %c0_i32 : i32, i32
  }
  func.func @transform_2(%arg0: i32, %arg1: i32) -> (i32, i32) {
    %c1_i32 = arith.constant 1 : i32
    %0 = arith.muli %arg0, %c1_i32 : i32
    %1 = arith.addi %0, %arg1 : i32
    %c0_i32 = arith.constant 0 : i32
    %c0_i32_0 = arith.constant 0 : i32
    return %1, %c0_i32 : i32, i32
  }
  func.func @transform_3(%arg0: i32, %arg1: i32) -> (i32, i32) {
    %c1_i32 = arith.constant 1 : i32
    %0 = arith.muli %arg0, %c1_i32 : i32
    %1 = arith.addi %0, %arg1 : i32
    %c0_i32 = arith.constant 0 : i32
    %c0_i32_0 = arith.constant 0 : i32
    return %1, %c0_i32 : i32, i32
  }
  func.func @transform_4(%arg0: i32, %arg1: i32) -> (i32, i32, i32, i32) {
    %c0_i32 = arith.constant 0 : i32
    %c0_i32_0 = arith.constant 0 : i32
    %c0_i32_1 = arith.constant 0 : i32
    %c0_i32_2 = arith.constant 0 : i32
    return %arg0, %c0_i32, %c0_i32_0, %c0_i32_1 : i32, i32, i32, i32
  }
}

</mosaic_0001>

<llo_original>
// kernel: tpu_custom_call.1
$region0: #{tpu_custom_call.1}
  #allocation0 [shape = 'u32[]', space=smem, size = 0x4, offset = 0x4, fixed_abs, tag = 'smem constant byte address 0x4 - core index']
  #allocation1 [shape = 'u32[144,128]{1,0:T(1,128)}', space=vmem, size = 0x12000, scoped, tag = 'internal scratch']
  #allocation2 [shape = 'f32[1]{0:T(128)S(6)}', space=smem, size = 0x200, scoped, tag = 'scoped memory for tpu_custom_call.1']
  %s0 = inlined_call_operand.<no memory space> [shape: f32[1], index: 0, kind: input, shape index: {}]
  %s1 = inlined_call_operand.hbm [shape: f32[16,128], index: 1, kind: input, shape index: {}]
  %s2 = inlined_call_operand.hbm [shape: f32[16,128], index: 2, kind: input, shape index: {}]
  %s3 = inlined_call_operand.hbm [shape: f32[16,128], index: 3, kind: input, shape index: {}]
  %s4 = inlined_call_operand.hbm [shape: f32[2,3,8,128], index: 4, kind: output, shape index: {}]
  %s5 = sld [smem:[#allocation0]]
  $region65: #{tpu_custom_call.1} parent=0
    _
  %s7 = ssub.s32 1, %s5
  %s8 = scalar_select 0, %s7, %s5
  %9 = sst [smem:[#allocation2]] %s0
  $region1: #{tpu_custom_call.1} parent=0
    #allocation3 [shape = 'u8[8192]{0}', space=vmem, size = 0x2000, scoped, tag = 'input window, operand 1']
    #allocation4 [shape = 's32[2]{0}', space=sflag, size = 0x8, scoped, tag = 'scoped memory for tpu_custom_call.1']
    #allocation5 [shape = 's32[2]{0}', space=sflag, size = 0x8, scoped, tag = 'scoped memory for tpu_custom_call.1']
    #allocation6 [shape = 'u8[8192]{0}', space=vmem, size = 0x2000, scoped, tag = 'input window, operand 2']
    #allocation7 [shape = 's32[2]{0}', space=sflag, size = 0x8, scoped, tag = 'scoped memory for tpu_custom_call.1']
    #allocation8 [shape = 'u8[8192]{0}', space=vmem, size = 0x2000, scoped, tag = 'input window, operand 3']
    #allocation9 [shape = 'u8[24576]{0}', space=vmem, size = 0x6000, scoped, tag = 'output window, operand 0']
    %10 = vsyncpa [#allocation4], 0
    %s11 = scalar_lea.sflag [#allocation4], 1
    %12 = vsyncpa %s11, 0
    %13 = vsyncpa [#allocation7], 0
    %s14 = scalar_lea.sflag [#allocation7], 1
    %15 = vsyncpa %s14, 0
    %16 = vsyncpa [#allocation5], 0
    %s17 = scalar_lea.sflag [#allocation5], 1
    %18 = vsyncpa %s17, 0
    loop: start=0, step=1, limit=4
    $region2: #{tpu_custom_call.1} parent=1 // loop_pre_header
      _
    $region3: #{tpu_custom_call.1} parent=1 // loop_header
      %s20 = sphi 0, %s24
      %p21 = scmp.ge.s32.totalorder %s20, 4
      %s27 = sphi 0, %s39
      %s28 = sphi 0, %s35
      %s29 = sphi 0, %s27
      %s30 = sphi 0, %s28
      %s31 = sphi 0, %s29
      %s32 = sphi 0, %s30
      %s40 = sphi 0, %s40
      %s42 = sphi 0, %s40
      %s43 = sphi 0, %s42
      %s57 = sphi 0, %s43
      %s65 = sphi 0, %s67
      %s68 = sphi 0, %s65
      %s69 = sphi 0, %s68
      %s85 = sphi 0, %s69
      %s93 = sphi 0, %s95
      %s96 = sphi 0, %s93
      %s97 = sphi 0, %s96
      %s113 = sphi 0, %s97
      %s121 = sphi 0, %s123
      %s124 = sphi 0, %s121
      %s125 = sphi 0, %s124
      %s141 = sphi 0, %s125
      %s147 = sphi 0, %s149
      %s150 = sphi 0, %s147
      %s151 = sphi 0, %s150
      %s167 = sphi 0, %s151
    $region4: #{tpu_custom_call.1} parent=1 // loop_header_branch
      %23 = sbr.rel (%p21) target = $region8
    $region5: #{tpu_custom_call.1} parent=1 // loop_body
      %s25 = ssub.s32 %s20, 1
      %s26 = ssub.s32 %s20, 2
      %s33 = sadd.s32 1, %s28
      %p34 = scmp.ge.s32.totalorder %s33, 1
      %s35 = scalar_select %p34, 0, %s33
      %s36 = sadd.s32 1, %s27
      %s37 = scalar_select %p34, %s36, %s27
      %p38 = scmp.ge.s32.totalorder %s37, 2
      %s39 = scalar_select %p38, 0, %s37
      %s41 = sadd.s32 %s40, 1
      %p44 = scmp.eq.s32.totalorder %s20, 1
      %p45 = scmp.ne.s32.totalorder %s40, %s42
      %p46 = scmp.eq.s32.totalorder %s20, 0
      %p47 = por %p45, %p46
      %p48 = scmp.ne.s32.totalorder %s40, %s42
      %p49 = scmp.eq.s32.totalorder %s25, 1
      %p50 = por %p48, %p49
      %p51 = scmp.ne.s32.totalorder %s42, %s43
      %p52 = scmp.eq.s32.totalorder %s25, 0
      %p53 = por %p51, %p52
      %p54 = scmp.ne.s32.totalorder %s42, %s43
      %p55 = scmp.eq.s32.totalorder %s26, 1
      %p56 = por %p54, %p55
      %p58 = scmp.ne.s32.totalorder %s43, %s57
      %p59 = scmp.eq.s32.totalorder %s26, 0
      %p60 = por %p58, %p59
      %s61 = sadd.s32 %s27, %s28
      %s62 = sadd.s32 %s39, %s35
      %s63 = ssub.s32 %s61, %s62
      %p64 = scmp.eq.s32.totalorder %s63, 0
      %s66 = sadd.s32 %s65, 1
      %s67 = scalar_select %p64, %s65, %s66
      %p70 = pneg %p64
      %p71 = scmp.eq.s32.totalorder %s20, 1
      %p72 = por %p70, %p71
      %p73 = scmp.ne.s32.totalorder %s65, %s68
      %p74 = scmp.eq.s32.totalorder %s20, 0
      %p75 = por %p73, %p74
      %p76 = scmp.ne.s32.totalorder %s65, %s68
      %p77 = scmp.eq.s32.totalorder %s25, 1
      %p78 = por %p76, %p77
      %p79 = scmp.ne.s32.totalorder %s68, %s69
      %p80 = scmp.eq.s32.totalorder %s25, 0
      %p81 = por %p79, %p80
      %p82 = scmp.ne.s32.totalorder %s68, %s69
      %p83 = scmp.eq.s32.totalorder %s26, 1
      %p84 = por %p82, %p83
      %p86 = scmp.ne.s32.totalorder %s69, %s85
      %p87 = scmp.eq.s32.totalorder %s26, 0
      %p88 = por %p86, %p87
      %s89 = sadd.s32 %s27, %s28
      %s90 = sadd.s32 %s39, %s35
      %s91 = ssub.s32 %s89, %s90
      %p92 = scmp.eq.s32.totalorder %s91, 0
      %s94 = sadd.s32 %s93, 1
      %s95 = scalar_select %p92, %s93, %s94
      %p98 = pneg %p92
      %p99 = scmp.eq.s32.totalorder %s20, 1
      %p100 = por %p98, %p99
      %p101 = scmp.ne.s32.totalorder %s93, %s96
      %p102 = scmp.eq.s32.totalorder %s20, 0
      %p103 = por %p101, %p102
      %p104 = scmp.ne.s32.totalorder %s93, %s96
      %p105 = scmp.eq.s32.totalorder %s25, 1
      %p106 = por %p104, %p105
      %p107 = scmp.ne.s32.totalorder %s96, %s97
      %p108 = scmp.eq.s32.totalorder %s25, 0
      %p109 = por %p107, %p108
      %p110 = scmp.ne.s32.totalorder %s96, %s97
      %p111 = scmp.eq.s32.totalorder %s26, 1
      %p112 = por %p110, %p111
      %p114 = scmp.ne.s32.totalorder %s97, %s113
      %p115 = scmp.eq.s32.totalorder %s26, 0
      %p116 = por %p114, %p115
      %s117 = sadd.s32 %s27, %s28
      %s118 = sadd.s32 %s39, %s35
      %s119 = ssub.s32 %s117, %s118
      %p120 = scmp.eq.s32.totalorder %s119, 0
      %s122 = sadd.s32 %s121, 1
      %s123 = scalar_select %p120, %s121, %s122
      %p126 = pneg %p120
      %p127 = scmp.eq.s32.totalorder %s20, 1
      %p128 = por %p126, %p127
      %p129 = scmp.ne.s32.totalorder %s121, %s124
      %p130 = scmp.eq.s32.totalorder %s20, 0
      %p131 = por %p129, %p130
      %p132 = scmp.ne.s32.totalorder %s121, %s124
      %p133 = scmp.eq.s32.totalorder %s25, 1
      %p134 = por %p132, %p133
      %p135 = scmp.ne.s32.totalorder %s124, %s125
      %p136 = scmp.eq.s32.totalorder %s25, 0
      %p137 = por %p135, %p136
      %p138 = scmp.ne.s32.totalorder %s124, %s125
      %p139 = scmp.eq.s32.totalorder %s26, 1
      %p140 = por %p138, %p139
      %p142 = scmp.ne.s32.totalorder %s125, %s141
      %p143 = scmp.eq.s32.totalorder %s26, 0
      %p144 = por %p142, %p143
      %s145 = ssub.s32 %s27, %s39
      %p146 = scmp.eq.s32.totalorder %s145, 0
      %s148 = sadd.s32 %s147, 1
      %s149 = scalar_select %p146, %s147, %s148
      %p152 = pneg %p146
      %p153 = scmp.eq.s32.totalorder %s20, 1
      %p154 = por %p152, %p153
      %p155 = scmp.ne.s32.totalorder %s147, %s150
      %p156 = scmp.eq.s32.totalorder %s20, 0
      %p157 = por %p155, %p156
      %p158 = scmp.ne.s32.totalorder %s147, %s150
      %p159 = scmp.eq.s32.totalorder %s25, 1
      %p160 = por %p158, %p159
      %p161 = scmp.ne.s32.totalorder %s150, %s151
      %p162 = scmp.eq.s32.totalorder %s25, 0
      %p163 = por %p161, %p162
      %p164 = scmp.ne.s32.totalorder %s150, %s151
      %p165 = scmp.eq.s32.totalorder %s26, 1
      %p166 = por %p164, %p165
      %p168 = scmp.ne.s32.totalorder %s151, %s167
      %p169 = scmp.eq.s32.totalorder %s26, 0
      %p170 = por %p168, %p169
      %p171 = scmp.le.s32.totalorder 1, %s20
      %p172 = scmp.lt.s32.totalorder %s20, 3
      %p173 = pnand %p171, %p172
      %p174 = pneg %p173
      // Predicated region
      $region9: #{tpu_custom_call.1} parent=5 // pred_check
        _
      $region10: #{tpu_custom_call.1} parent=5 // pred_check_branch
        %176 = sbr.rel (%p173) target = $region12
      $region11: #{tpu_custom_call.1} parent=5 // pred_region
        %s177 = ssub.s32 %s20, 1
        // Predicated region
        $region13: #{tpu_custom_call.1} parent=11 // pred_check
          %p178 = pneg %p53
        $region14: #{tpu_custom_call.1} parent=11 // pred_check_branch
          %180 = sbr.rel (%p178) target = $region16
        $region15: #{tpu_custom_call.1} parent=11 // pred_region
          _
        $region16: #{tpu_custom_call.1} parent=11 // pred_fallthru
          _
      $region12: #{tpu_custom_call.1} parent=5 // pred_fallthru
        _
      %p181 = scmp.lt.s32.totalorder %s20, 2
      // Predicated region
      $region17: #{tpu_custom_call.1} parent=5 // pred_check
        %p182 = pneg %p181
      $region18: #{tpu_custom_call.1} parent=5 // pred_check_branch
        %184 = sbr.rel (%p182) target = $region20
      $region19: #{tpu_custom_call.1} parent=5 // pred_region
        // Predicated region
        $region21: #{tpu_custom_call.1} parent=19 // pred_check
          %p185 = pneg %p75
        $region22: #{tpu_custom_call.1} parent=19 // pred_check_branch
          %187 = sbr.rel (%p185) target = $region24
        $region23: #{tpu_custom_call.1} parent=19 // pred_region
          %s188 = sand.u32 %s65, 1
          %s189 = scalar_lea.sflag [#allocation4], %s188
          %s190 = sand.u32 %s65, 1
          %s191 = smul.addr %s190, 8
          %s192 = scalar_lea.vmem [#allocation3], %s191
          %s193 = sadd.s32 %s27, %s28
          %s195 = ssub.s32 128, 128
          %196 = vsyncadd %s189, %s195
          %s197 = smul.addr %s193, 128
          %s198 = scalar_lea.hbm %s1, %s197
          %s200 = sshll.u32 %s192, 4
          %s201 = int_to_ptr.vmem [resolvable:$true] %s200
          %203 = dma.hbm_to_vmem [thread:$0]  %s198, 128, %s201, %s189
        $region24: #{tpu_custom_call.1} parent=19 // pred_fallthru
          _
        // Predicated region
        $region25: #{tpu_custom_call.1} parent=19 // pred_check
          %p204 = pneg %p103
        $region26: #{tpu_custom_call.1} parent=19 // pred_check_branch
          %206 = sbr.rel (%p204) target = $region28
        $region27: #{tpu_custom_call.1} parent=19 // pred_region
          %s207 = sand.u32 %s20, 1
          %s208 = scalar_lea.sflag [#allocation7], %s207
          %s209 = sand.u32 %s93, 1
          %s210 = smul.addr %s209, 8
          %s211 = scalar_lea.vmem [#allocation6], %s210
          %s212 = sadd.s32 %s27, %s28
          %s214 = ssub.s32 128, 128
          %215 = vsyncadd %s208, %s214
          %s216 = smul.addr %s212, 128
          %s217 = scalar_lea.hbm %s2, %s216
          %s219 = sshll.u32 %s211, 4
          %s220 = int_to_ptr.vmem [resolvable:$true] %s219
          %222 = dma.hbm_to_vmem [thread:$0]  %s217, 128, %s220, %s208
        $region28: #{tpu_custom_call.1} parent=19 // pred_fallthru
          _
        // Predicated region
        $region29: #{tpu_custom_call.1} parent=19 // pred_check
          %p223 = pneg %p131
        $region30: #{tpu_custom_call.1} parent=19 // pred_check_branch
          %225 = sbr.rel (%p223) target = $region32
        $region31: #{tpu_custom_call.1} parent=19 // pred_region
          %s226 = sand.u32 %s20, 1
          %s227 = scalar_lea.sflag [#allocation7], %s226
          %s228 = sand.u32 %s121, 1
          %s229 = smul.addr %s228, 8
          %s230 = scalar_lea.vmem [#allocation8], %s229
          %s231 = sadd.s32 %s27, %s28
          %s233 = ssub.s32 128, 128
          %234 = vsyncadd %s227, %s233
          %s235 = smul.addr %s231, 128
          %s236 = scalar_lea.hbm %s3, %s235
          %s238 = sshll.u32 %s230, 4
          %s239 = int_to_ptr.vmem [resolvable:$true] %s238
          %241 = dma.hbm_to_vmem [thread:$0]  %s236, 128, %s239, %s227
        $region32: #{tpu_custom_call.1} parent=19 // pred_fallthru
          _
      $region20: #{tpu_custom_call.1} parent=5 // pred_fallthru
        _
      %p242 = scmp.le.s32.totalorder 1, %s20
      %p243 = scmp.lt.s32.totalorder %s20, 3
      %p244 = pnand %p242, %p243
      %p245 = pneg %p244
      // Predicated region
      $region33: #{tpu_custom_call.1} parent=5 // pred_check
        _
      $region34: #{tpu_custom_call.1} parent=5 // pred_check_branch
        %247 = sbr.rel (%p244) target = $region36
      $region35: #{tpu_custom_call.1} parent=5 // pred_region
        %s248 = ssub.s32 %s20, 1
        %s249 = sand.u32 %s68, 1
        %s250 = scalar_lea.sflag [#allocation4], %s249
        %s251 = sand.u32 %s68, 1
        %s252 = smul.addr %s251, 8
        %s253 = scalar_lea.vmem [#allocation3], %s252
        // Predicated region
        $region37: #{tpu_custom_call.1} parent=35 // pred_check
          %p254 = pneg %p81
        $region38: #{tpu_custom_call.1} parent=35 // pred_check_branch
          %256 = sbr.rel (%p254) target = $region40
        $region39: #{tpu_custom_call.1} parent=35 // pred_region
          %257 = dma.done %s250, 128
        $region40: #{tpu_custom_call.1} parent=35 // pred_fallthru
          _
        %s258 = sand.u32 %s25, 1
        %s259 = scalar_lea.sflag [#allocation7], %s258
        %s260 = sand.u32 %s96, 1
        %s261 = smul.addr %s260, 8
        %s262 = scalar_lea.vmem [#allocation6], %s261
        // Predicated region
        $region41: #{tpu_custom_call.1} parent=35 // pred_check
          %p263 = pneg %p109
        $region42: #{tpu_custom_call.1} parent=35 // pred_check_branch
          %265 = sbr.rel (%p263) target = $region44
        $region43: #{tpu_custom_call.1} parent=35 // pred_region
          %266 = dma.done %s259, 128
        $region44: #{tpu_custom_call.1} parent=35 // pred_fallthru
          _
        %s267 = sand.u32 %s25, 1
        %s268 = scalar_lea.sflag [#allocation7], %s267
        %s269 = sand.u32 %s124, 1
        %s270 = smul.addr %s269, 8
        %s271 = scalar_lea.vmem [#allocation8], %s270
        // Predicated region
        $region45: #{tpu_custom_call.1} parent=35 // pred_check
          %p272 = pneg %p137
        $region46: #{tpu_custom_call.1} parent=35 // pred_check_branch
          %274 = sbr.rel (%p272) target = $region48
        $region47: #{tpu_custom_call.1} parent=35 // pred_region
          %275 = dma.done %s268, 128
        $region48: #{tpu_custom_call.1} parent=35 // pred_fallthru
          _
        %p276 = pneg %p53
        %p277 = pneg %p50
        %s278 = sand.u32 %s68, 1
        %s279 = scalar_lea.sflag [#allocation4], %s278
        %s280 = sand.u32 %s68, 1
        %s281 = smul.addr %s280, 8
        %s282 = scalar_lea.vmem [#allocation3], %s281
        %p283 = pneg %p81
        %p284 = pneg %p78
        %s285 = sand.u32 %s25, 1
        %s286 = scalar_lea.sflag [#allocation7], %s285
        %s287 = sand.u32 %s96, 1
        %s288 = smul.addr %s287, 8
        %s289 = scalar_lea.vmem [#allocation6], %s288
        %p290 = pneg %p109
        %p291 = pneg %p106
        %s292 = sand.u32 %s25, 1
        %s293 = scalar_lea.sflag [#allocation7], %s292
        %s294 = sand.u32 %s124, 1
        %s295 = smul.addr %s294, 8
        %s296 = scalar_lea.vmem [#allocation8], %s295
        %p297 = pneg %p137
        %p298 = pneg %p134
        %p299 = pneg %p163
        %p300 = pneg %p160
        %s301 = sand.u32 %s150, 1
        %s302 = scalar_lea.sflag [#allocation5], %s301
        %s303 = sand.u32 %s150, 1
        %s304 = smul.addr %s303, 24
        %s305 = scalar_lea.vmem [#allocation9], %s304
        %s306 = sadd.s32 %s29, %s30
        %s307 = sadd.s32 %s29, %s30
        %s308 = sadd.s32 %s29, %s30
        %p309 = scmp.eq.s32.totalorder %s30, 0
        // Predicated region
        $region49: #{tpu_custom_call.1} parent=35 // pred_check
          %p310 = pneg %p309
        $region50: #{tpu_custom_call.1} parent=35 // pred_check_branch
          %312 = sbr.rel (%p310) target = $region52
        $region51: #{tpu_custom_call.1} parent=35 // pred_region
          %313 = vst [vmem:[%s305] sm:$0xff] 0.0
          %314 = vst [vmem:[%s305 + $0x8] sm:$0xff] 0.0
          %315 = vst [vmem:[%s305 + $0x10] sm:$0xff] 0.0
        $region52: #{tpu_custom_call.1} parent=35 // pred_fallthru
          _
        %s316 = sld [smem:[#allocation2]]
        %s317 = sadd.s32 %s29, %s30
        %v318 = vlaneseq
        %v319 = vshrl.u32 %v318, 7
        %v320 = vlaneseq
        %v321 = vand.u32 %v320, 127
        %s322 = smul.u32 %s317, 8
        %v323 = vstv %s322
        %v324 = vadd.s32 %v323, %v319
        %v325 = vmul.u32 %v324, 128
        %v326 = vadd.s32 %v325, %v321
        %vm327 = vcmp.lt.s32.totalorder %v326, 200
        %v328 = vld [vmem:[%s271] sm:$0xff]
        %v329 = vstv %s316
        %vm330 = vcmp.le.f32.partialorder %v328, %v329
        %vm331 = vmand %vm327, %vm330
        %v332 = vsel %vm331, 1, 0
        %v333 = vcvt.s32.f32 %v332
        %v334 = vld [vmem:[%s253] sm:$0xff]
        %v335 = vrsqrt.pop %v334
        %v336 = vmul.f32 %v334, %v335
        %vm337 = vcmp.eq.f32.partialorder %v334, inf
        %v338 = vsel %vm337, %v334, %v336
        %vm339 = vcmp.eq.f32.partialorder %v334, 0.0
        %v340 = vand.u32 %v334, 2147483648
        %v341 = vsel %vm339, %v340, %v338
        %v342 = vmul.f32 %v341, %v333
        %v343 = vld [vmem:[%s262] sm:$0xff]
        %v344 = vand.u32 2147483647, %v343
        %v345 = vmul.f32 %v344, %v333
        %v346 = vld [vmem:[%s305] sm:$0xff]
        %v347 = vadd.f32 %v342, 0.0
        %v348 = vadd.f32 %v346, %v347
        %349 = vst [vmem:[%s305] sm:$0xff] %v348
        %s350 = scalar_lea.vmem %s305, 8 [#allocation9]
        %v351 = vld [vmem:[%s350] sm:$0xff]
        %v352 = vadd.f32 %v345, 0.0
        %v353 = vadd.f32 %v351, %v352
        %354 = vst [vmem:[%s350] sm:$0xff] %v353
        %s355 = scalar_lea.vmem %s305, 16 [#allocation9]
        %v356 = vld [vmem:[%s355] sm:$0xff]
        %v357 = vadd.f32 %v333, 0.0
        %v358 = vadd.f32 %v356, %v357
        %359 = vst [vmem:[%s355] sm:$0xff] %v358
        %s360 = sand.u32 %s150, 1
        %s361 = scalar_lea.sflag [#allocation5], %s360
        %s362 = sand.u32 %s150, 1
        %s363 = smul.addr %s362, 24
        %s364 = scalar_lea.vmem [#allocation9], %s363
        // Predicated region
        $region53: #{tpu_custom_call.1} parent=35 // pred_check
          %p365 = pneg %p160
        $region54: #{tpu_custom_call.1} parent=35 // pred_check_branch
          %367 = sbr.rel (%p365) target = $region56
        $region55: #{tpu_custom_call.1} parent=35 // pred_region
          %s369 = ssub.s32 384, 384
          %370 = vsyncadd %s361, %s369
          %s371 = smul.addr %s29, 3
          %s372 = smul.addr %s371, 128
          %s373 = scalar_lea.hbm %s4, %s372
          %s374 = sshll.u32 %s364, 4
          %s375 = int_to_ptr.vmem [resolvable:$true] %s374
          %380 = dma.vmem_to_hbm [thread:$0]  %s375, 384, %s373, %s361, 128, 128, 8
        $region56: #{tpu_custom_call.1} parent=35 // pred_fallthru
          _
      $region36: #{tpu_custom_call.1} parent=5 // pred_fallthru
        _
      %p381 = scmp.le.s32.totalorder 2, %s20
      // Predicated region
      $region57: #{tpu_custom_call.1} parent=5 // pred_check
        %p382 = pneg %p381
      $region58: #{tpu_custom_call.1} parent=5 // pred_check_branch
        %384 = sbr.rel (%p382) target = $region60
      $region59: #{tpu_custom_call.1} parent=5 // pred_region
        %s385 = ssub.s32 %s20, 2
        // Predicated region
        $region61: #{tpu_custom_call.1} parent=59 // pred_check
          %p386 = pneg %p166
        $region62: #{tpu_custom_call.1} parent=59 // pred_check_branch
          %388 = sbr.rel (%p386) target = $region64
        $region63: #{tpu_custom_call.1} parent=59 // pred_region
          %s389 = sand.u32 %s151, 1
          %s390 = scalar_lea.sflag [#allocation5], %s389
          %s391 = sand.u32 %s151, 1
          %s392 = smul.addr %s391, 24
          %s393 = scalar_lea.vmem [#allocation9], %s392
          %394 = dma.done %s390, 384
        $region64: #{tpu_custom_call.1} parent=59 // pred_fallthru
          _
      $region60: #{tpu_custom_call.1} parent=5 // pred_fallthru
        _
    $region6: #{tpu_custom_call.1} parent=1 // loop_footer
      %s24 = sadd.s32 1, %s20
    $region7: #{tpu_custom_call.1} parent=1 // loop_footer_branch
      %19 = sbr.rel target = $region3
    $region8: #{tpu_custom_call.1} parent=1 // loop_exit
      _
    %395 = vsyncpa [#allocation4], 1
    %s396 = scalar_lea.sflag [#allocation4], 1
    %397 = vsyncpa %s396, 1
    %398 = vsyncpa [#allocation7], 1
    %s399 = scalar_lea.sflag [#allocation7], 1
    %400 = vsyncpa %s399, 1
    %401 = vsyncpa [#allocation5], 1
    %s402 = scalar_lea.sflag [#allocation5], 1
    %403 = vsyncpa %s402, 1

</llo_original>
